<compile_context>
chip_gen: v5e
topology: v5e:2x2
jax: 0.10.0
libtpu: 0.0.40
codegen_flags: <defaults>
</compile_context>

<pallas_src>
import functools

import jax
import jax.numpy as jnp
from jax.experimental import pallas as pl
from jax.experimental.pallas import tpu as pltpu


def _round_up(x, m):
    return (x + m - 1) // m * m


# ---------------------------------------------------------------------------
# Fused Linear + bias + LayerNorm kernel
# ---------------------------------------------------------------------------
def _linear_layernorm_kernel(x_ref, w_ref, bgb_ref, o_ref, *, eps, true_n, need_mask):
    # x_ref: (bm, K=784), w_ref: (K, feat_pad), bgb_ref: (8, feat_pad) rows=(b,g,beta),
    # o_ref: (bm, feat_pad).
    y = jnp.dot(x_ref[...], w_ref[...], preferred_element_type=jnp.float32)
    y = y + bgb_ref[0:1, :]                              # bias (padded cols stay 0)

    # LayerNorm over the TRUE feature count (biased variance, like PyTorch).
    inv_n = jnp.float32(1.0 / true_n)
    mean = jnp.sum(y, axis=-1, keepdims=True) * inv_n    # padded cols are exactly 0
    yc = y - mean
    if need_mask:
        col = jax.lax.broadcasted_iota(jnp.int32, y.shape, dimension=1)
        yc = jnp.where(col < true_n, yc, 0.0)            # keep padded cols out of var
    var = jnp.sum(yc * yc, axis=-1, keepdims=True) * inv_n
    yn = yc * jax.lax.rsqrt(var + eps)
    # gamma/beta padded with zeros -> padded output columns are exactly 0.
    o_ref[...] = (yn * bgb_ref[1:2, :] + bgb_ref[2:3, :]).astype(o_ref.dtype)


# ---------------------------------------------------------------------------
# One-time parameter preparation (crop fold + transpose + lane padding + pack)
# ---------------------------------------------------------------------------
def prepare_params(params):
    """Fold the 18x18 crop into the weights; pre-transpose; pad features to 128."""
    w = params["linear1_w"]                               # (out, 324), PyTorch layout
    out_size = w.shape[0]
    feat_pad = _round_up(out_size, 128)

    # Scatter cropped-window weights into full 28x28 pixel positions (zeros elsewhere).
    w_img = w.reshape(out_size, 18, 18)
    w_full = jnp.zeros((out_size, 28, 28), jnp.float32).at[:, 5:23, 5:23].set(w_img)
    w_full = w_full.reshape(out_size, 28 * 28).T          # (784, out) pre-transposed
    w_full = jnp.pad(w_full, ((0, 0), (0, feat_pad - out_size)))  # (784, feat_pad)

    bgb = jnp.zeros((8, feat_pad), jnp.float32)
    bgb = bgb.at[0, :out_size].set(params["linear1_b"])
    bgb = bgb.at[1, :out_size].set(params["ln_gamma"])
    bgb = bgb.at[2, :out_size].set(params["ln_beta"])
    return {"w": w_full, "bgb": bgb}


# ---------------------------------------------------------------------------
# Forward wrapper
# ---------------------------------------------------------------------------
def layernorm_net_forward(prepared, x, out_size, *, eps=1e-5, block_m=1024):
    """x: (N, 1, 28, 28) float32 -> (N, out_size) float32."""
    n = x.shape[0]
    w = prepared["w"]                                      # (784, feat_pad)
    bgb = prepared["bgb"]                                  # (8, feat_pad)
    k, feat_pad = w.shape

    # Free row-major reshape (crop is already folded into w).
    xf = x.reshape(n, -1).astype(jnp.float32)              # (N, 784)
    assert xf.shape[1] == k

    # Big M tile; keep >=2 grid steps when possible so "parallel" can use both
    # TensorCores on v7x.
    bm = min(block_m, _round_up(n, 8))
    if _round_up(n, bm) // bm < 2 and bm > 8:
        bm = _round_up(pl.cdiv(n, 2), 8)
    n_pad = _round_up(n, bm)
    if n_pad != n:
        xf = jnp.pad(xf, ((0, n_pad - n), (0, 0)))

    kernel = functools.partial(
        _linear_layernorm_kernel,
        eps=eps,
        true_n=out_size,
        need_mask=(feat_pad != out_size),
    )
    cost = pl.CostEstimate(
        flops=2 * n_pad * k * feat_pad,
        transcendentals=n_pad,
        bytes_accessed=4 * (n_pad * k + k * feat_pad + 8 * feat_pad + n_pad * feat_pad),
    )

    out = pl.pallas_call(
        kernel,
        out_shape=jax.ShapeDtypeStruct((n_pad, feat_pad), jnp.float32),
        grid=(n_pad // bm,),
        in_specs=[
            pl.BlockSpec((bm, k), lambda i: (i, 0)),          # activations: tile M
            pl.BlockSpec((k, feat_pad), lambda i: (0, 0)),    # weights: VMEM-resident
            pl.BlockSpec((8, feat_pad), lambda i: (0, 0)),    # packed bias/gamma/beta
        ],
        out_specs=pl.BlockSpec((bm, feat_pad), lambda i: (i, 0)),
        compiler_params=pltpu.CompilerParams(
            dimension_semantics=("parallel",),
        ),
        cost_estimate=cost,
    )(xf, w, bgb)
    return out[:n, :out_size]


# ---------------------------------------------------------------------------
# Parameters (PyTorch layout) + pure-JAX reference
# ---------------------------------------------------------------------------
def init_params(key, out_size, in_features=18 * 18):
    k1, k2 = jax.random.split(key)
    scale = 1.0 / jnp.sqrt(float(in_features))
    return {
        "linear1_w": scale * jax.random.normal(k1, (out_size, in_features), jnp.float32),
        "linear1_b": scale * jax.random.normal(k2, (out_size,), jnp.float32),
        "ln_gamma": jnp.ones((out_size,), jnp.float32),   # PyTorch LayerNorm defaults
        "ln_beta": jnp.zeros((out_size,), jnp.float32),
    }


def _reference_forward(params, x, eps=1e-5):
    n = x.shape[0]
    xc = x[:, :, 5:-5, 5:-5].reshape(n, -1)
    y = xc @ params["linear1_w"].T + params["linear1_b"]
    mean = jnp.mean(y, axis=-1, keepdims=True)
    var = jnp.mean((y - mean) ** 2, axis=-1, keepdims=True)
    yn = (y - mean) / jnp.sqrt(var + eps)
    return yn * params["ln_gamma"] + params["ln_beta"]


if __name__ == "__main__":
    key = jax.random.PRNGKey(0)
    pkey, xkey = jax.random.split(key)

    out_size = 32
    batch = 4
    params = init_params(pkey, out_size)
    x = jax.random.normal(xkey, (batch, 1, 28, 28), jnp.float32)

    prepared = prepare_params(params)                      # one-time prep (outside jit)
    fwd = jax.jit(functools.partial(layernorm_net_forward, out_size=out_size))
    out = jax.block_until_ready(fwd(prepared, x))

    assert out.shape == (batch, out_size) and out.dtype == jnp.float32
    ref = _reference_forward(params, x)
    assert jnp.allclose(out, ref, atol=2e-2, rtol=2e-2), "mismatch vs. JAX reference"
    print("KERNEL_OK")
</pallas_src>

<mosaic_0001>
module attributes {stable_mosaic.version = 11 : i64} {
  func.func @_linear_layernorm_kernel(%arg0: i32, %arg1: memref<8x784xf32, #tpu.memory_space<vmem>>, %arg2: memref<784x128xf32, #tpu.memory_space<vmem>>, %arg3: memref<8x128xf32, #tpu.memory_space<vmem>>, %arg4: memref<8x128xf32, #tpu.memory_space<vmem>>) attributes {dimension_semantics = [#tpu.dimension_semantics<parallel>], iteration_bounds = array<i64: 1>, scalar_prefetch = 0 : i64, scratch_operands = 0 : i64, tpu.core_type = #tpu.core_type<tc>, window_params = [{transform_indices = @transform_0, window_bounds = array<i64: 8, 784>}, {pipeline_mode = #tpu.pipeline_mode<synchronous>, transform_indices = @transform_1, window_bounds = array<i64: 784, 128>}, {pipeline_mode = #tpu.pipeline_mode<synchronous>, transform_indices = @transform_2, window_bounds = array<i64: 8, 128>}, {transform_indices = @transform_3, window_bounds = array<i64: 8, 128>}]} {
    %c0 = arith.constant 0 : index
    %c0_0 = arith.constant 0 : index
    %0 = vector.load %arg1[%c0, %c0_0] : memref<8x784xf32, #tpu.memory_space<vmem>>, vector<8x784xf32>
    %c0_1 = arith.constant 0 : index
    %c0_2 = arith.constant 0 : index
    %1 = vector.load %arg2[%c0_1, %c0_2] : memref<784x128xf32, #tpu.memory_space<vmem>>, vector<784x128xf32>
    %cst = arith.constant dense<0.000000e+00> : vector<8x128xf32>
    %2 = tpu.matmul %0, %1, %cst {dimension_numbers = #tpu.dot_dimension_numbers<[1], [0], [0], [1], [0, 0, 1, 1], [], []>} : vector<8x784xf32>, vector<784x128xf32>, vector<8x128xf32> -> vector<8x128xf32>
    %c0_3 = arith.constant 0 : index
    %c0_4 = arith.constant 0 : index
    %3 = vector.load %arg3[%c0_3, %c0_4] : memref<8x128xf32, #tpu.memory_space<vmem>>, vector<1x128xf32>
    %4 = vector.broadcast %3 : vector<1x128xf32> to vector<8x128xf32>
    %5 = arith.addf %2, %4 : vector<8x128xf32>
    %cst_5 = arith.constant dense<0.000000e+00> : vector<8xf32>
    %6 = vector.multi_reduction <add>, %5, %cst_5 [1] : vector<8x128xf32> to vector<8xf32>
    %7 = vector.shape_cast %6 : vector<8xf32> to vector<8x1xf32>
    %cst_6 = arith.constant 3.125000e-02 : f32
    %8 = vector.broadcast %cst_6 : f32 to vector<8x1xf32>
    %9 = arith.mulf %7, %8 : vector<8x1xf32>
    %10 = vector.broadcast %9 : vector<8x1xf32> to vector<8x128xf32>
    %11 = arith.subf %5, %10 : vector<8x128xf32>
    %12 = tpu.iota {dimensions = array<i32: 1>} : vector<8x128xi32>
    %c32_i32 = arith.constant 32 : i32
    %13 = vector.broadcast %c32_i32 : i32 to vector<8x128xi32>
    %14 = arith.cmpi slt, %12, %13 : vector<8x128xi32>
    %cst_7 = arith.constant 0.000000e+00 : f32
    %15 = vector.broadcast %cst_7 : f32 to vector<8x128xf32>
    %16 = arith.select %14, %11, %15 : vector<8x128xi1>, vector<8x128xf32>
    %17 = arith.mulf %16, %16 : vector<8x128xf32>
    %cst_8 = arith.constant dense<0.000000e+00> : vector<8xf32>
    %18 = vector.multi_reduction <add>, %17, %cst_8 [1] : vector<8x128xf32> to vector<8xf32>
    %19 = vector.shape_cast %18 : vector<8xf32> to vector<8x1xf32>
    %cst_9 = arith.constant 3.125000e-02 : f32
    %20 = vector.broadcast %cst_9 : f32 to vector<8x1xf32>
    %21 = arith.mulf %19, %20 : vector<8x1xf32>
    %cst_10 = arith.constant 9.99999974E-6 : f32
    %22 = vector.broadcast %cst_10 : f32 to vector<8x1xf32>
    %23 = arith.addf %21, %22 : vector<8x1xf32>
    %24 = math.rsqrt %23 : vector<8x1xf32>
    %25 = vector.broadcast %24 : vector<8x1xf32> to vector<8x128xf32>
    %26 = arith.mulf %16, %25 : vector<8x128xf32>
    %c1 = arith.constant 1 : index
    %c0_11 = arith.constant 0 : index
    %27 = vector.load %arg3[%c1, %c0_11] : memref<8x128xf32, #tpu.memory_space<vmem>>, vector<1x128xf32>
    %28 = vector.broadcast %27 : vector<1x128xf32> to vector<8x128xf32>
    %29 = arith.mulf %26, %28 : vector<8x128xf32>
    %c2 = arith.constant 2 : index
    %c0_12 = arith.constant 0 : index
    %30 = vector.load %arg3[%c2, %c0_12] : memref<8x128xf32, #tpu.memory_space<vmem>>, vector<1x128xf32>
    %31 = vector.broadcast %30 : vector<1x128xf32> to vector<8x128xf32>
    %32 = arith.addf %29, %31 : vector<8x128xf32>
    %c0_13 = arith.constant 0 : index
    %c0_14 = arith.constant 0 : index
    %33 = vector.load %arg4[%c0_13, %c0_14] : memref<8x128xf32, #tpu.memory_space<vmem>>, vector<8x128xf32>
    tpu.vector_store %arg4[%c0_13, %c0_14], %32 {strides = array<i32>} : memref<8x128xf32, #tpu.memory_space<vmem>>, vector<8x128xf32>,
    return
  }
  func.func @transform_0(%arg0: i32) -> (i32, i32) {
    %c0_i32 = arith.constant 0 : i32
    %c0_i32_0 = arith.constant 0 : i32
    return %arg0, %c0_i32 : i32, i32
  }
  func.func @transform_1(%arg0: i32) -> (i32, i32) {
    %c0_i32 = arith.constant 0 : i32
    %c0_i32_0 = arith.constant 0 : i32
    %c0_i32_1 = arith.constant 0 : i32
    return %c0_i32, %c0_i32_0 : i32, i32
  }
  func.func @transform_2(%arg0: i32) -> (i32, i32) {
    %c0_i32 = arith.constant 0 : i32
    %c0_i32_0 = arith.constant 0 : i32
    %c0_i32_1 = arith.constant 0 : i32
    return %c0_i32, %c0_i32_0 : i32, i32
  }
  func.func @transform_3(%arg0: i32) -> (i32, i32) {
    %c0_i32 = arith.constant 0 : i32
    %c0_i32_0 = arith.constant 0 : i32
    return %arg0, %c0_i32 : i32, i32
  }
}

</mosaic_0001>

<llo_original>
// kernel: layernorm_net_forward.1
$region0: #{layernorm_net_forward.1}
  #allocation0 [shape = 'u32[]', space=smem, size = 0x4, offset = 0x4, fixed_abs, tag = 'smem constant byte address 0x4 - core index']
  #allocation1 [shape = 'u32[72,128]{1,0:T(1,128)}', space=vmem, size = 0x9000, scoped, tag = 'internal scratch']
  %s0 = inlined_call_operand.vmem [shape: f32[8,784], index: 0, kind: input, shape index: {}]
  %s1 = inlined_call_operand.hbm [shape: f32[784,128], index: 1, kind: input, shape index: {}]
  %s2 = inlined_call_operand.vmem [shape: f32[8,128], index: 2, kind: input, shape index: {}]
  %s3 = inlined_call_operand.vmem [shape: f32[8,128], index: 3, kind: output, shape index: {}]
  %s4 = sld [smem:[#allocation0]]
  $region26: #{layernorm_net_forward.1} parent=0
    _
  %s6 = ssub.s32 1, %s4
  %s7 = scalar_select 0, %s6, %s4
  $region1: #{layernorm_net_forward.1} parent=0
    #allocation2 [shape = 'u8[401408]{0}', space=vmem, size = 0x62000, scoped, tag = 'input window, operand 1, single buffered']
    #allocation3 [shape = 's32[1]{0}', space=sflag, size = 0x4, scoped, tag = 'scoped memory for layernorm_net_forward.1']
    %8 = vsyncpa [#allocation3], 0
    // Predicated region
    $region2: #{layernorm_net_forward.1} parent=1 // pred_check
      _
    $region3: #{layernorm_net_forward.1} parent=1 // pred_check_branch
      %10 = sbr.rel (0) target = $region5
    $region4: #{layernorm_net_forward.1} parent=1 // pred_region
      _
    $region5: #{layernorm_net_forward.1} parent=1 // pred_fallthru
      _
    // Predicated region
    $region6: #{layernorm_net_forward.1} parent=1 // pred_check
      _
    $region7: #{layernorm_net_forward.1} parent=1 // pred_check_branch
      %12 = sbr.rel (0) target = $region9
    $region8: #{layernorm_net_forward.1} parent=1 // pred_region
      %14 = vsyncadd [#allocation3], 0
      %s15 = sshll.u32 %s1, 4
      %s16 = int_to_ptr.hbm [resolvable:$true] %s15
      %s17 = sshll.u32 [#allocation2], 4
      %s18 = int_to_ptr.vmem [resolvable:$true] %s17
      %23 = dma.hbm_to_vmem [thread:$0]  %s16, 12544, %s18, [#allocation3], 128, 128, 8
    $region9: #{layernorm_net_forward.1} parent=1 // pred_fallthru
      _
    // Predicated region
    $region10: #{layernorm_net_forward.1} parent=1 // pred_check
      _
    $region11: #{layernorm_net_forward.1} parent=1 // pred_check_branch
      %25 = sbr.rel (0) target = $region13
    $region12: #{layernorm_net_forward.1} parent=1 // pred_region
      _
    $region13: #{layernorm_net_forward.1} parent=1 // pred_fallthru
      _
    // Predicated region
    $region14: #{layernorm_net_forward.1} parent=1 // pred_check
      _
    $region15: #{layernorm_net_forward.1} parent=1 // pred_check_branch
      %27 = sbr.rel (0) target = $region17
    $region16: #{layernorm_net_forward.1} parent=1 // pred_region
      %29 = dma.done [#allocation3], 12544
    $region17: #{layernorm_net_forward.1} parent=1 // pred_fallthru
      _
    %v30 = vld [vmem:[%s0] sm:$0xff]
    %v31 = vld [vmem:[%s0 + $0x8] sm:$0xff]
    %v32 = vld [vmem:[%s0 + $0x10] sm:$0xff]
    %v33 = vld [vmem:[%s0 + $0x18] sm:$0xff]
    %v34 = vld [vmem:[%s0 + $0x20] sm:$0xff]
    %v35 = vld [vmem:[%s0 + $0x28] sm:$0xff]
    %v36 = vld [vmem:[%s0 + $0x30] sm:$0xff]
    %v37 = vld [vmem:[#allocation2] sm:$0xff]
    %v38 = vld [vmem:[#allocation2 + $0x8] sm:$0xff]
    %v39 = vld [vmem:[#allocation2 + $0x10] sm:$0xff]
    %v40 = vld [vmem:[#allocation2 + $0x18] sm:$0xff]
    %v41 = vld [vmem:[#allocation2 + $0x20] sm:$0xff]
    %v42 = vld [vmem:[#allocation2 + $0x28] sm:$0xff]
    %v43 = vld [vmem:[#allocation2 + $0x30] sm:$0xff]
    %v44 = vld [vmem:[#allocation2 + $0x38] sm:$0xff]
    %v45 = vld [vmem:[#allocation2 + $0x40] sm:$0xff]
    %v46 = vld [vmem:[#allocation2 + $0x48] sm:$0xff]
    %v47 = vld [vmem:[#allocation2 + $0x50] sm:$0xff]
    %v48 = vld [vmem:[#allocation2 + $0x58] sm:$0xff]
    %v49 = vld [vmem:[#allocation2 + $0x60] sm:$0xff]
    %v50 = vld [vmem:[#allocation2 + $0x68] sm:$0xff]
    %v51 = vld [vmem:[#allocation2 + $0x70] sm:$0xff]
    %v52 = vld [vmem:[#allocation2 + $0x78] sm:$0xff]
    %v53 = vld [vmem:[#allocation2 + $0x80] sm:$0xff]
    %v54 = vld [vmem:[#allocation2 + $0x88] sm:$0xff]
    %v55 = vld [vmem:[#allocation2 + $0x90] sm:$0xff]
    %v56 = vld [vmem:[#allocation2 + $0x98] sm:$0xff]
    %v57 = vld [vmem:[#allocation2 + $0xa0] sm:$0xff]
    %v58 = vld [vmem:[#allocation2 + $0xa8] sm:$0xff]
    %v59 = vld [vmem:[#allocation2 + $0xb0] sm:$0xff]
    %v60 = vld [vmem:[#allocation2 + $0xb8] sm:$0xff]
    %v61 = vld [vmem:[#allocation2 + $0xc0] sm:$0xff]
    %v62 = vld [vmem:[#allocation2 + $0xc8] sm:$0xff]
    %v63 = vld [vmem:[#allocation2 + $0xd0] sm:$0xff]
    %v64 = vld [vmem:[#allocation2 + $0xd8] sm:$0xff]
    %v65 = vld [vmem:[#allocation2 + $0xe0] sm:$0xff]
    %v66 = vld [vmem:[#allocation2 + $0xe8] sm:$0xff]
    %v67 = vld [vmem:[#allocation2 + $0xf0] sm:$0xff]
    %v68 = vld [vmem:[#allocation2 + $0xf8] sm:$0xff]
    %v69 = vld [vmem:[#allocation2 + $0x100] sm:$0xff]
    %v70 = vld [vmem:[#allocation2 + $0x108] sm:$0xff]
    %v71 = vld [vmem:[#allocation2 + $0x110] sm:$0xff]
    %v72 = vld [vmem:[#allocation2 + $0x118] sm:$0xff]
    %v73 = vld [vmem:[#allocation2 + $0x120] sm:$0xff]
    %v74 = vld [vmem:[#allocation2 + $0x128] sm:$0xff]
    %v75 = vld [vmem:[#allocation2 + $0x130] sm:$0xff]
    %v76 = vld [vmem:[#allocation2 + $0x138] sm:$0xff]
    %v77 = vld [vmem:[#allocation2 + $0x140] sm:$0xff]
    %v78 = vld [vmem:[#allocation2 + $0x148] sm:$0xff]
    %v79 = vld [vmem:[#allocation2 + $0x150] sm:$0xff]
    %v80 = vld [vmem:[#allocation2 + $0x158] sm:$0xff]
    %v81 = vld [vmem:[#allocation2 + $0x160] sm:$0xff]
    %v82 = vld [vmem:[#allocation2 + $0x168] sm:$0xff]
    %v83 = vld [vmem:[#allocation2 + $0x170] sm:$0xff]
    %v84 = vld [vmem:[#allocation2 + $0x178] sm:$0xff]
    %v85 = vld [vmem:[#allocation2 + $0x180] sm:$0xff]
    %v86 = vld [vmem:[#allocation2 + $0x188] sm:$0xff]
    %v87 = vld [vmem:[#allocation2 + $0x190] sm:$0xff]
    %v88 = vld [vmem:[#allocation2 + $0x198] sm:$0xff]
    %v89 = vld [vmem:[#allocation2 + $0x1a0] sm:$0xff]
    %v90 = vld [vmem:[#allocation2 + $0x1a8] sm:$0xff]
    %v91 = vld [vmem:[#allocation2 + $0x1b0] sm:$0xff]
    %v92 = vld [vmem:[#allocation2 + $0x1b8] sm:$0xff]
    %v93 = vld [vmem:[#allocation2 + $0x1c0] sm:$0xff]
    %v94 = vld [vmem:[#allocation2 + $0x1c8] sm:$0xff]
    %v95 = vld [vmem:[#allocation2 + $0x1d0] sm:$0xff]
    %v96 = vld [vmem:[#allocation2 + $0x1d8] sm:$0xff]
    %v97 = vld [vmem:[#allocation2 + $0x1e0] sm:$0xff]
    %v98 = vld [vmem:[#allocation2 + $0x1e8] sm:$0xff]
    %v99 = vld [vmem:[#allocation2 + $0x1f0] sm:$0xff]
    %v100 = vld [vmem:[#allocation2 + $0x1f8] sm:$0xff]
    %v101 = vld [vmem:[#allocation2 + $0x200] sm:$0xff]
    %v102 = vld [vmem:[#allocation2 + $0x208] sm:$0xff]
    %v103 = vld [vmem:[#allocation2 + $0x210] sm:$0xff]
    %v104 = vld [vmem:[#allocation2 + $0x218] sm:$0xff]
    %v105 = vld [vmem:[#allocation2 + $0x220] sm:$0xff]
    %v106 = vld [vmem:[#allocation2 + $0x228] sm:$0xff]
    %v107 = vld [vmem:[#allocation2 + $0x230] sm:$0xff]
    %v108 = vld [vmem:[#allocation2 + $0x238] sm:$0xff]
    %v109 = vld [vmem:[#allocation2 + $0x240] sm:$0xff]
    %v110 = vld [vmem:[#allocation2 + $0x248] sm:$0xff]
    %v111 = vld [vmem:[#allocation2 + $0x250] sm:$0xff]
    %v112 = vld [vmem:[#allocation2 + $0x258] sm:$0xff]
    %v113 = vld [vmem:[#allocation2 + $0x260] sm:$0xff]
    %v114 = vld [vmem:[#allocation2 + $0x268] sm:$0xff]
    %v115 = vld [vmem:[#allocation2 + $0x270] sm:$0xff]
    %v116 = vld [vmem:[#allocation2 + $0x278] sm:$0xff]
    %v117 = vld [vmem:[#allocation2 + $0x280] sm:$0xff]
    %v118 = vld [vmem:[#allocation2 + $0x288] sm:$0xff]
    %v119 = vld [vmem:[#allocation2 + $0x290] sm:$0xff]
    %v120 = vld [vmem:[#allocation2 + $0x298] sm:$0xff]
    %v121 = vld [vmem:[#allocation2 + $0x2a0] sm:$0xff]
    %v122 = vld [vmem:[#allocation2 + $0x2a8] sm:$0xff]
    %v123 = vld [vmem:[#allocation2 + $0x2b0] sm:$0xff]
    %v124 = vld [vmem:[#allocation2 + $0x2b8] sm:$0xff]
    %v125 = vld [vmem:[#allocation2 + $0x2c0] sm:$0xff]
    %v126 = vld [vmem:[#allocation2 + $0x2c8] sm:$0xff]
    %v127 = vld [vmem:[#allocation2 + $0x2d0] sm:$0xff]
    %v128 = vld [vmem:[#allocation2 + $0x2d8] sm:$0xff]
    %v129 = vld [vmem:[#allocation2 + $0x2e0] sm:$0xff]
    %v130 = vld [vmem:[#allocation2 + $0x2e8] sm:$0xff]
    %v131 = vld [vmem:[#allocation2 + $0x2f0] sm:$0xff]
    %v132 = vld [vmem:[#allocation2 + $0x2f8] sm:$0xff]
    %v133 = vld [vmem:[#allocation2 + $0x300] sm:$0xff]
    %v134 = vld [vmem:[#allocation2 + $0x308] sm:$0xff]
    %v135 = vld [vmem:[%s2] sm:$0x1]
    %v136 = vperm.slane %v135, 0
    %vm137 = vcmask 130048
    %v139 = vsel %vm137, %v36, 0
    %141 = vmatpush.msra.mxu0 %v52
    %142 = vmatpush.msra.mxu0 %v51
    %143 = vmatpush.msra.mxu0 %v50
    %144 = vmatpush.msra.mxu0 %v49
    %145 = vmatpush.msra.mxu0 %v48
    %146 = vmatpush.msra.mxu0 %v47
    %147 = vmatpush.msra.mxu0 %v46
    %148 = vmatpush.msra.mxu0 %v45
    %149 = vmatpush.msra.mxu0 %v44
    %150 = vmatpush.msra.mxu0 %v43
    %151 = vmatpush.msra.mxu0 %v42
    %152 = vmatpush.msra.mxu0 %v41
    %153 = vmatpush.msra.mxu0 %v40
    %154 = vmatpush.msra.mxu0 %v39
    %155 = vmatpush.msra.mxu0 %v38
    %156 = vmatpush.msra.mxu0 %v37
    %157 = vmatmul.f32.gmra.mxu0 %v30
    %v158 = vpop.f32.mrf.mxu0
    %v159 = vadd.f32 %v136, %v158
    %160 = vdwg.mxu0
    %161 = vmatpush.msra.mxu0 %v68
    %162 = vmatpush.msra.mxu0 %v67
    %163 = vmatpush.msra.mxu0 %v66
    %164 = vmatpush.msra.mxu0 %v65
    %165 = vmatpush.msra.mxu0 %v64
    %166 = vmatpush.msra.mxu0 %v63
    %167 = vmatpush.msra.mxu0 %v62
    %168 = vmatpush.msra.mxu0 %v61
    %169 = vmatpush.msra.mxu0 %v60
    %170 = vmatpush.msra.mxu0 %v59
    %171 = vmatpush.msra.mxu0 %v58
    %172 = vmatpush.msra.mxu0 %v57
    %173 = vmatpush.msra.mxu0 %v56
    %174 = vmatpush.msra.mxu0 %v55
    %175 = vmatpush.msra.mxu0 %v54
    %176 = vmatpush.msra.mxu0 %v53
    %177 = vmatmul.f32.gmra.mxu0 %v31
    %v178 = vpop.f32.mrf.mxu0
    %v179 = vadd.f32 %v159, %v178
    %180 = vdwg.mxu0
    %181 = vmatpush.msra.mxu0 %v84
    %182 = vmatpush.msra.mxu0 %v83
    %183 = vmatpush.msra.mxu0 %v82
    %184 = vmatpush.msra.mxu0 %v81
    %185 = vmatpush.msra.mxu0 %v80
    %186 = vmatpush.msra.mxu0 %v79
    %187 = vmatpush.msra.mxu0 %v78
    %188 = vmatpush.msra.mxu0 %v77
    %189 = vmatpush.msra.mxu0 %v76
    %190 = vmatpush.msra.mxu0 %v75
    %191 = vmatpush.msra.mxu0 %v74
    %192 = vmatpush.msra.mxu0 %v73
    %193 = vmatpush.msra.mxu0 %v72
    %194 = vmatpush.msra.mxu0 %v71
    %195 = vmatpush.msra.mxu0 %v70
    %196 = vmatpush.msra.mxu0 %v69
    %197 = vmatmul.f32.gmra.mxu0 %v32
    %v198 = vpop.f32.mrf.mxu0
    %v199 = vadd.f32 %v179, %v198
    %200 = vdwg.mxu0
    %201 = vmatpush.msra.mxu0 %v100
    %202 = vmatpush.msra.mxu0 %v99
    %203 = vmatpush.msra.mxu0 %v98
    %204 = vmatpush.msra.mxu0 %v97
    %205 = vmatpush.msra.mxu0 %v96
    %206 = vmatpush.msra.mxu0 %v95
    %207 = vmatpush.msra.mxu0 %v94
    %208 = vmatpush.msra.mxu0 %v93
    %209 = vmatpush.msra.mxu0 %v92
    %210 = vmatpush.msra.mxu0 %v91
    %211 = vmatpush.msra.mxu0 %v90
    %212 = vmatpush.msra.mxu0 %v89
    %213 = vmatpush.msra.mxu0 %v88
    %214 = vmatpush.msra.mxu0 %v87
    %215 = vmatpush.msra.mxu0 %v86
    %216 = vmatpush.msra.mxu0 %v85
    %217 = vmatmul.f32.gmra.mxu0 %v33
    %v218 = vpop.f32.mrf.mxu0
    %v219 = vadd.f32 %v199, %v218
    %220 = vdwg.mxu0
    %221 = vmatpush.msra.mxu0 %v116
    %222 = vmatpush.msra.mxu0 %v115
    %223 = vmatpush.msra.mxu0 %v114
    %224 = vmatpush.msra.mxu0 %v113
    %225 = vmatpush.msra.mxu0 %v112
    %226 = vmatpush.msra.mxu0 %v111
    %227 = vmatpush.msra.mxu0 %v110
    %228 = vmatpush.msra.mxu0 %v109
    %229 = vmatpush.msra.mxu0 %v108
    %230 = vmatpush.msra.mxu0 %v107
    %231 = vmatpush.msra.mxu0 %v106
    %232 = vmatpush.msra.mxu0 %v105
    %233 = vmatpush.msra.mxu0 %v104
    %234 = vmatpush.msra.mxu0 %v103
    %235 = vmatpush.msra.mxu0 %v102
    %236 = vmatpush.msra.mxu0 %v101
    %237 = vmatmul.f32.gmra.mxu0 %v34
    %v238 = vpop.f32.mrf.mxu0
    %v239 = vadd.f32 %v219, %v238
    %240 = vdwg.mxu0
    %241 = vmatpush.msra.mxu0 %v132
    %242 = vmatpush.msra.mxu0 %v131
    %243 = vmatpush.msra.mxu0 %v130
    %244 = vmatpush.msra.mxu0 %v129
    %245 = vmatpush.msra.mxu0 %v128
    %246 = vmatpush.msra.mxu0 %v127
    %247 = vmatpush.msra.mxu0 %v126
    %248 = vmatpush.msra.mxu0 %v125
    %249 = vmatpush.msra.mxu0 %v124
    %250 = vmatpush.msra.mxu0 %v123
    %251 = vmatpush.msra.mxu0 %v122
    %252 = vmatpush.msra.mxu0 %v121
    %253 = vmatpush.msra.mxu0 %v120
    %254 = vmatpush.msra.mxu0 %v119
    %255 = vmatpush.msra.mxu0 %v118
    %256 = vmatpush.msra.mxu0 %v117
    %257 = vmatmul.f32.gmra.mxu0 %v35
    %v258 = vpop.f32.mrf.mxu0
    %v259 = vadd.f32 %v239, %v258
    %260 = vdwg.mxu0
    %261 = vmatpush.msra.mxu0 0.0
    %262 = vmatpush.msra.mxu0 0.0
    %263 = vmatpush.msra.mxu0 0.0
    %264 = vmatpush.msra.mxu0 0.0
    %265 = vmatpush.msra.mxu0 0.0
    %266 = vmatpush.msra.mxu0 0.0
    %267 = vmatpush.msra.mxu0 0.0
    %268 = vmatpush.msra.mxu0 0.0
    %269 = vmatpush.msra.mxu0 0.0
    %270 = vmatpush.msra.mxu0 0.0
    %271 = vmatpush.msra.mxu0 0.0
    %272 = vmatpush.msra.mxu0 0.0
    %273 = vmatpush.msra.mxu0 0.0
    %274 = vmatpush.msra.mxu0 0.0
    %275 = vmatpush.msra.mxu0 %v134
    %276 = vmatpush.msra.mxu0 %v133
    %277 = vmatmul.f32.gmra.mxu0 %v139
    %v278 = vpop.f32.mrf.mxu0
    %v279 = vadd.f32 %v259, %v278
    %280 = vdwg.mxu0
    %281 = vadd.xlane.f32.xlu0 %v279
    %v282 = vpop.xlane.xlu0 %281
    %v283 = vmul.f32 %v282, 0.03125
    %v284 = vsub.f32 %v279, %v283
    %v285 = vlaneseq
    %v286 = vand.u32 %v285, 127
    %vm287 = vcmp.lt.s32.totalorder %v286, 32
    %v288 = vsel %vm287, %v284, 0.0
    %v289 = vmul.f32 %v288, %v288
    %290 = vadd.xlane.f32.xlu0 %v289
    %v291 = vpop.xlane.xlu0 %290
    %v292 = vmul.f32 %v291, 0.03125
    %v293 = vadd.f32 %v292, 1e-05
    %v294 = vrsqrt.pop %v293
    %v295 = vmul.f32 %v294, %v293
    %v296 = vmul.f32 %v295, %v294
    %v297 = vmul.f32 0.5, %v296
    %v298 = vsub.f32 1.5, %v297
    %v299 = vmul.f32 %v294, %v298
    %vm300 = vweird.f32 %v293
    %vm301 = vweird.f32 %v294
    %vm302 = vmor %vm300, %vm301
    %v303 = vsel %vm302, %v294, %v299
    %v304 = vmul.f32 %v288, %v303
    %v305 = vld [vmem:[%s2 + $0x1] sm:$0x1]
    %v306 = vperm.slane %v305, 0
    %v307 = vmul.f32 %v304, %v306
    %v308 = vld [vmem:[%s2 + $0x2] sm:$0x1]
    %v309 = vperm.slane %v308, 0
    %v310 = vadd.f32 %v307, %v309
    %311 = vst [vmem:[%s3] sm:$0xff] %v310
    // Predicated region
    $region18: #{layernorm_net_forward.1} parent=1 // pred_check
      _
    $region19: #{layernorm_net_forward.1} parent=1 // pred_check_branch
      %313 = sbr.rel (0) target = $region21
    $region20: #{layernorm_net_forward.1} parent=1 // pred_region
      _
    $region21: #{layernorm_net_forward.1} parent=1 // pred_fallthru
      _
    // Predicated region
    $region22: #{layernorm_net_forward.1} parent=1 // pred_check
      _
    $region23: #{layernorm_net_forward.1} parent=1 // pred_check_branch
      %315 = sbr.rel (0) target = $region25
    $region24: #{layernorm_net_forward.1} parent=1 // pred_region
      _
    $region25: #{layernorm_net_forward.1} parent=1 // pred_fallthru
      _
    %316 = vsyncpa [#allocation3], 1

</llo_original>
